<compile_context>
chip_gen: v6e
topology: v6e:2x2x1
jax: 0.10.0
libtpu: 0.0.40
codegen_flags: <defaults>
</compile_context>

<pallas_src>
import jax
import jax.numpy as jnp
from jax.experimental import pallas as pl
from jax.experimental.pallas import tpu as pltpu

LANE = 128
MAX_TILE_ROWS = 1024   # (1024,128) f32 = 512 KiB per input per pipeline buffer
NUM_SPLITS = 2         # leading "parallel" grid axis (v7x 2-TC megacore)
PAD_VAL = 100.0        # labels == preds > 20  ->  zero SMAPE and zero MSE term


def _round_up(x: int, m: int) -> int:
    return ((x + m - 1) // m) * m


def _mix_loss_kernel(w_ref, lab_ref, prd_ref, out_ref, acc_ref):
    i = pl.program_id(1)

    @pl.when(i == 0)
    def _():
        acc_ref[...] = jnp.zeros_like(acc_ref)

    lab = lab_ref[...].astype(jnp.float32)
    prd = prd_ref[...].astype(jnp.float32)
    w = w_ref[0].astype(jnp.float32)

    diff = prd - lab
    abs_diff = jnp.abs(diff)

    # CustomMSELoss term
    mse_mask = jnp.where(lab <= 0.0, w, jnp.float32(1.0))
    mse_term = mse_mask * diff * diff

    # SMAPELoss term
    smape_mask = jnp.where(lab <= 0.0, w * 2.0,
                           jnp.where(lab <= 20.0, w, jnp.float32(1.0)))
    smape_term = smape_mask * (2.0 * abs_diff) / (jnp.abs(prd) + jnp.abs(lab))

    contrib = mse_term + smape_term  # (tile_rows, LANE)

    tile_rows = contrib.shape[0]
    if tile_rows == 8:
        acc_ref[...] += contrib
    else:
        # fold rows into the (8,128) vreg-shaped accumulator (VPU adds only)
        acc_ref[...] += contrib.reshape(tile_rows // 8, 8, LANE).sum(axis=0)

    @pl.when(i == pl.num_programs(1) - 1)
    def _():
        out_ref[...] = acc_ref[...].reshape(1, 8, LANE)


def mix_loss(labels: jax.Array, preds: jax.Array, w=2.0) -> jax.Array:
    """MixLoss.forward: SMAPELoss(labels, preds, w) + CustomMSELoss(labels, preds, w)."""
    assert labels.shape == preds.shape
    total = labels.size

    rows_needed = -(-total // LANE)
    tile_rows = min(MAX_TILE_ROWS, _round_up(-(-rows_needed // NUM_SPLITS), 8))
    n_inner = -(-rows_needed // (NUM_SPLITS * tile_rows))
    padded_rows = NUM_SPLITS * n_inner * tile_rows
    pad = padded_rows * LANE - total

    # TODO(synk): if the upstream producer layout makes this flatten a relayout
    # copy, fuse it into the pallas_call input DMA via
    # CompilerParams(allow_input_fusion=...) instead.
    def to2d(x):
        flat = x.reshape(-1)
        if pad:
            flat = jnp.pad(flat, (0, pad), constant_values=PAD_VAL)
        return flat.reshape(padded_rows, LANE)

    lab2d = to2d(labels)
    prd2d = to2d(preds)
    w_arr = jnp.asarray([w], dtype=jnp.float32)  # scalar prefetch -> SMEM

    partials = pl.pallas_call(
        _mix_loss_kernel,
        out_shape=jax.ShapeDtypeStruct((NUM_SPLITS, 8, LANE), jnp.float32),
        grid_spec=pltpu.PrefetchScalarGridSpec(
            num_scalar_prefetch=1,
            grid=(NUM_SPLITS, n_inner),
            in_specs=[
                pl.BlockSpec((tile_rows, LANE),
                             lambda p, i, w_ref: (p * n_inner + i, 0)),
                pl.BlockSpec((tile_rows, LANE),
                             lambda p, i, w_ref: (p * n_inner + i, 0)),
            ],
            out_specs=pl.BlockSpec((1, 8, LANE), lambda p, i, w_ref: (p, 0, 0)),
            scratch_shapes=[pltpu.VMEM((8, LANE), jnp.float32)],
        ),
        compiler_params=pltpu.CompilerParams(
            dimension_semantics=("parallel", "arbitrary"),
        ),
    )(w_arr, lab2d, prd2d)

    # Single tiny cross-lane reduce of the per-split (8,128) partials.
    return jnp.sum(partials) / jnp.float32(total)


def mix_loss_ref(labels, preds, w=2.0):
    labels = labels.astype(jnp.float32)
    preds = preds.astype(jnp.float32)
    diff = preds - labels

    mse_mask = jnp.where(labels <= 0.0, jnp.float32(w), jnp.float32(1.0))
    mse = jnp.mean(mse_mask * diff * diff)

    smape_mask = jnp.where(labels <= 0.0, jnp.float32(2.0 * w),
                           jnp.where(labels <= 20.0, jnp.float32(w),
                                     jnp.float32(1.0)))
    smape = jnp.mean(smape_mask * 2.0 * jnp.abs(diff)
                     / (jnp.abs(preds) + jnp.abs(labels)))
    return smape + mse


if __name__ == "__main__":
    key = jax.random.PRNGKey(0)
    k1, k2 = jax.random.split(key)

    # Small NCHW-shaped labels/preds consistent with the loss module.
    B, C, H, W = 2, 4, 16, 16
    labels = jax.random.normal(k1, (B, C, H, W), dtype=jnp.float32)
    preds = jax.random.normal(k2, (B, C, H, W), dtype=jnp.float32)
    w = 2.0  # MixLoss default

    loss = mix_loss(labels, preds, w)
    loss = jax.block_until_ready(loss)

    ref = mix_loss_ref(labels, preds, w)
    assert jnp.allclose(loss, ref, rtol=1e-5, atol=1e-6), (loss, ref)

    print("KERNEL_OK")
</pallas_src>

<mosaic_0001>
module attributes {stable_mosaic.version = 11 : i64} {
  func.func @_mix_loss_kernel(%arg0: i32, %arg1: i32, %arg2: memref<1xf32, #tpu.memory_space<smem>>, %arg3: memref<8x128xf32, #tpu.memory_space<vmem>>, %arg4: memref<8x128xf32, #tpu.memory_space<vmem>>, %arg5: memref<1x8x128xf32, #tpu.memory_space<vmem>>, %arg6: memref<8x128xf32, #tpu.memory_space<vmem>>) attributes {dimension_semantics = [#tpu.dimension_semantics<parallel>, #tpu.dimension_semantics<arbitrary>], iteration_bounds = array<i64: 2, 1>, scalar_prefetch = 1 : i64, scratch_operands = 1 : i64, tpu.core_type = #tpu.core_type<tc>, window_params = [{transform_indices = @transform_0, window_bounds = array<i64: 8, 128>}, {transform_indices = @transform_1, window_bounds = array<i64: 8, 128>}, {transform_indices = @transform_2, window_bounds = array<i64: 1, 8, 128>}]} {
    %c0_i32 = arith.constant 0 : i32
    %0 = arith.cmpi eq, %arg1, %c0_i32 : i32
    %1 = arith.extui %0 : i1 to i32
    %c0_i32_0 = arith.constant 0 : i32
    %2 = arith.cmpi ne, %1, %c0_i32_0 : i32
    scf.if %2 {
      %cst_17 = arith.constant 0.000000e+00 : f32
      %39 = vector.broadcast %cst_17 : f32 to vector<8x128xf32>
      %c0_18 = arith.constant 0 : index
      %c0_19 = arith.constant 0 : index
      %40 = vector.load %arg6[%c0_18, %c0_19] : memref<8x128xf32, #tpu.memory_space<vmem>>, vector<8x128xf32>
      tpu.vector_store %arg6[%c0_18, %c0_19], %39 {strides = array<i32>} : memref<8x128xf32, #tpu.memory_space<vmem>>, vector<8x128xf32>,
    } else {
    }
    %c0 = arith.constant 0 : index
    %c0_1 = arith.constant 0 : index
    %3 = vector.load %arg3[%c0, %c0_1] : memref<8x128xf32, #tpu.memory_space<vmem>>, vector<8x128xf32>
    %c0_2 = arith.constant 0 : index
    %c0_3 = arith.constant 0 : index
    %4 = vector.load %arg4[%c0_2, %c0_3] : memref<8x128xf32, #tpu.memory_space<vmem>>, vector<8x128xf32>
    %c0_4 = arith.constant 0 : index
    %5 = memref.load %arg2[%c0_4] : memref<1xf32, #tpu.memory_space<smem>>
    %6 = arith.subf %4, %3 : vector<8x128xf32>
    %7 = math.absf %6 : vector<8x128xf32>
    %cst = arith.constant 0.000000e+00 : f32
    %8 = vector.broadcast %cst : f32 to vector<8x128xf32>
    %9 = arith.cmpf ole, %3, %8 : vector<8x128xf32>
    %cst_5 = arith.constant 1.000000e+00 : f32
    %10 = vector.broadcast %5 : f32 to vector<8x128xf32>
    %11 = vector.broadcast %cst_5 : f32 to vector<8x128xf32>
    %12 = arith.select %9, %10, %11 : vector<8x128xi1>, vector<8x128xf32>
    %13 = arith.mulf %12, %6 : vector<8x128xf32>
    %14 = arith.mulf %13, %6 : vector<8x128xf32>
    %cst_6 = arith.constant 0.000000e+00 : f32
    %15 = vector.broadcast %cst_6 : f32 to vector<8x128xf32>
    %16 = arith.cmpf ole, %3, %15 : vector<8x128xf32>
    %cst_7 = arith.constant 2.000000e+00 : f32
    %17 = arith.mulf %5, %cst_7 : f32
    %cst_8 = arith.constant 2.000000e+01 : f32
    %18 = vector.broadcast %cst_8 : f32 to vector<8x128xf32>
    %19 = arith.cmpf ole, %3, %18 : vector<8x128xf32>
    %cst_9 = arith.constant 1.000000e+00 : f32
    %20 = vector.broadcast %5 : f32 to vector<8x128xf32>
    %21 = vector.broadcast %cst_9 : f32 to vector<8x128xf32>
    %22 = arith.select %19, %20, %21 : vector<8x128xi1>, vector<8x128xf32>
    %23 = vector.broadcast %17 : f32 to vector<8x128xf32>
    %24 = arith.select %16, %23, %22 : vector<8x128xi1>, vector<8x128xf32>
    %cst_10 = arith.constant 2.000000e+00 : f32
    %25 = vector.broadcast %cst_10 : f32 to vector<8x128xf32>
    %26 = arith.mulf %25, %7 : vector<8x128xf32>
    %27 = arith.mulf %24, %26 : vector<8x128xf32>
    %28 = math.absf %4 : vector<8x128xf32>
    %29 = math.absf %3 : vector<8x128xf32>
    %30 = arith.addf %28, %29 : vector<8x128xf32>
    %31 = arith.divf %27, %30 : vector<8x128xf32>
    %32 = arith.addf %14, %31 : vector<8x128xf32>
    %c0_11 = arith.constant 0 : index
    %c0_12 = arith.constant 0 : index
    %33 = vector.load %arg6[%c0_11, %c0_12] : memref<8x128xf32, #tpu.memory_space<vmem>>, vector<8x128xf32>
    %34 = arith.addf %33, %32 : vector<8x128xf32>
    %c0_13 = arith.constant 0 : index
    %c0_14 = arith.constant 0 : index
    %35 = vector.load %arg6[%c0_13, %c0_14] : memref<8x128xf32, #tpu.memory_space<vmem>>, vector<8x128xf32>
    tpu.vector_store %arg6[%c0_13, %c0_14], %34 {strides = array<i32>} : memref<8x128xf32, #tpu.memory_space<vmem>>, vector<8x128xf32>,
    %c0_i32_15 = arith.constant 0 : i32
    %36 = arith.cmpi eq, %arg1, %c0_i32_15 : i32
    %37 = arith.extui %36 : i1 to i32
    %c0_i32_16 = arith.constant 0 : i32
    %38 = arith.cmpi ne, %37, %c0_i32_16 : i32
    scf.if %38 {
      %c0_17 = arith.constant 0 : index
      %c0_18 = arith.constant 0 : index
      %39 = vector.load %arg6[%c0_17, %c0_18] : memref<8x128xf32, #tpu.memory_space<vmem>>, vector<8x128xf32>
      %40 = vector.shape_cast %39 : vector<8x128xf32> to vector<1x8x128xf32>
      %c0_19 = arith.constant 0 : index
      %c0_20 = arith.constant 0 : index
      %c0_21 = arith.constant 0 : index
      %41 = vector.load %arg5[%c0_19, %c0_20, %c0_21] : memref<1x8x128xf32, #tpu.memory_space<vmem>>, vector<1x8x128xf32>
      tpu.vector_store %arg5[%c0_19, %c0_20, %c0_21], %40 {strides = array<i32>} : memref<1x8x128xf32, #tpu.memory_space<vmem>>, vector<1x8x128xf32>,
    } else {
    }
    return
  }
  func.func @transform_0(%arg0: i32, %arg1: i32, %arg2: memref<1xf32, #tpu.memory_space<smem>>) -> (i32, i32) {
    %c1_i32 = arith.constant 1 : i32
    %0 = arith.muli %arg0, %c1_i32 : i32
    %1 = arith.addi %0, %arg1 : i32
    %c0_i32 = arith.constant 0 : i32
    %c0_i32_0 = arith.constant 0 : i32
    return %1, %c0_i32 : i32, i32
  }
  func.func @transform_1(%arg0: i32, %arg1: i32, %arg2: memref<1xf32, #tpu.memory_space<smem>>) -> (i32, i32) {
    %c1_i32 = arith.constant 1 : i32
    %0 = arith.muli %arg0, %c1_i32 : i32
    %1 = arith.addi %0, %arg1 : i32
    %c0_i32 = arith.constant 0 : i32
    %c0_i32_0 = arith.constant 0 : i32
    return %1, %c0_i32 : i32, i32
  }
  func.func @transform_2(%arg0: i32, %arg1: i32, %arg2: memref<1xf32, #tpu.memory_space<smem>>) -> (i32, i32, i32) {
    %c0_i32 = arith.constant 0 : i32
    %c0_i32_0 = arith.constant 0 : i32
    %c0_i32_1 = arith.constant 0 : i32
    return %arg0, %c0_i32, %c0_i32_0 : i32, i32, i32
  }
}

</mosaic_0001>

<llo_original>
// kernel: tpu_custom_call.1
$region0: #{tpu_custom_call.1}
  #allocation0 [shape = 'u32[]', space=smem, size = 0x4, offset = 0x4, fixed_abs, tag = 'smem constant byte address 0x4 - core index']
  #allocation1 [shape = 'u32[144,128]{1,0:T(1,128)}', space=vmem, size = 0x12000, scoped, tag = 'internal scratch']
  #allocation2 [shape = 'f32[8,128]{1,0:T(8,128)}', space=vmem, size = 0x1000, scoped, tag = 'scratch operand']
  #allocation3 [shape = 's32[1]{0}', space=sflag, size = 0x4, scoped, tag = 'scoped memory for tpu_custom_call.1']
  #allocation4 [shape = 'f32[1]{0:T(128)S(6)}', space=smem, size = 0x200, scoped, tag = 'prefetched SMEM operand 0']
  %s0 = inlined_call_operand.<no memory space> [shape: f32[1], index: 0, kind: input, shape index: {}]
  %s1 = inlined_call_operand.hbm [shape: f32[16,128], index: 1, kind: input, shape index: {}]
  %s2 = inlined_call_operand.hbm [shape: f32[16,128], index: 2, kind: input, shape index: {}]
  %s3 = inlined_call_operand.hbm [shape: f32[2,8,128], index: 3, kind: output, shape index: {}]
  %s4 = sld [smem:[#allocation0]]
  $region57: #{tpu_custom_call.1} parent=0
    _
  %s6 = ssub.s32 1, %s4
  %s7 = scalar_select 0, %s6, %s4
  %8 = sst [smem:[#allocation4]] %s0
  $region1: #{tpu_custom_call.1} parent=0
    #allocation5 [shape = 'u8[8192]{0}', space=vmem, size = 0x2000, scoped, tag = 'input window, operand 1']
    #allocation6 [shape = 's32[2]{0}', space=sflag, size = 0x8, scoped, tag = 'scoped memory for tpu_custom_call.1']
    #allocation7 [shape = 's32[2]{0}', space=sflag, size = 0x8, scoped, tag = 'scoped memory for tpu_custom_call.1']
    #allocation8 [shape = 'u8[8192]{0}', space=vmem, size = 0x2000, scoped, tag = 'input window, operand 2']
    #allocation9 [shape = 's32[2]{0}', space=sflag, size = 0x8, scoped, tag = 'scoped memory for tpu_custom_call.1']
    #allocation10 [shape = 'u8[8192]{0}', space=vmem, size = 0x2000, scoped, tag = 'output window, operand 0']
    %9 = vsyncpa [#allocation6], 0
    %s10 = scalar_lea.sflag [#allocation6], 1
    %11 = vsyncpa %s10, 0
    %12 = vsyncpa [#allocation9], 0
    %s13 = scalar_lea.sflag [#allocation9], 1
    %14 = vsyncpa %s13, 0
    %15 = vsyncpa [#allocation7], 0
    %s16 = scalar_lea.sflag [#allocation7], 1
    %17 = vsyncpa %s16, 0
    loop: start=0, step=1, limit=4
    $region2: #{tpu_custom_call.1} parent=1 // loop_pre_header
      _
    $region3: #{tpu_custom_call.1} parent=1 // loop_header
      %s19 = sphi 0, %s23
      %p20 = scmp.ge.s32.totalorder %s19, 4
      %s26 = sphi 0, %s38
      %s27 = sphi 0, %s34
      %s28 = sphi 0, %s26
      %s29 = sphi 0, %s27
      %s30 = sphi 0, %s28
      %s31 = sphi 0, %s29
      %s43 = sphi 0, %s45
      %s46 = sphi 0, %s43
      %s47 = sphi 0, %s46
      %s63 = sphi 0, %s47
      %s71 = sphi 0, %s73
      %s74 = sphi 0, %s71
      %s75 = sphi 0, %s74
      %s91 = sphi 0, %s75
      %s97 = sphi 0, %s99
      %s100 = sphi 0, %s97
      %s101 = sphi 0, %s100
      %s117 = sphi 0, %s101
    $region4: #{tpu_custom_call.1} parent=1 // loop_header_branch
      %22 = sbr.rel (%p20) target = $region8
    $region5: #{tpu_custom_call.1} parent=1 // loop_body
      %s24 = ssub.s32 %s19, 1
      %s25 = ssub.s32 %s19, 2
      %s32 = sadd.s32 1, %s27
      %p33 = scmp.ge.s32.totalorder %s32, 1
      %s34 = scalar_select %p33, 0, %s32
      %s35 = sadd.s32 1, %s26
      %s36 = scalar_select %p33, %s35, %s26
      %p37 = scmp.ge.s32.totalorder %s36, 2
      %s38 = scalar_select %p37, 0, %s36
      %s39 = sadd.s32 %s26, %s27
      %s40 = sadd.s32 %s38, %s34
      %s41 = ssub.s32 %s39, %s40
      %p42 = scmp.eq.s32.totalorder %s41, 0
      %s44 = sadd.s32 %s43, 1
      %s45 = scalar_select %p42, %s43, %s44
      %p48 = pneg %p42
      %p49 = scmp.eq.s32.totalorder %s19, 1
      %p50 = por %p48, %p49
      %p51 = scmp.ne.s32.totalorder %s43, %s46
      %p52 = scmp.eq.s32.totalorder %s19, 0
      %p53 = por %p51, %p52
      %p54 = scmp.ne.s32.totalorder %s43, %s46
      %p55 = scmp.eq.s32.totalorder %s24, 1
      %p56 = por %p54, %p55
      %p57 = scmp.ne.s32.totalorder %s46, %s47
      %p58 = scmp.eq.s32.totalorder %s24, 0
      %p59 = por %p57, %p58
      %p60 = scmp.ne.s32.totalorder %s46, %s47
      %p61 = scmp.eq.s32.totalorder %s25, 1
      %p62 = por %p60, %p61
      %p64 = scmp.ne.s32.totalorder %s47, %s63
      %p65 = scmp.eq.s32.totalorder %s25, 0
      %p66 = por %p64, %p65
      %s67 = sadd.s32 %s26, %s27
      %s68 = sadd.s32 %s38, %s34
      %s69 = ssub.s32 %s67, %s68
      %p70 = scmp.eq.s32.totalorder %s69, 0
      %s72 = sadd.s32 %s71, 1
      %s73 = scalar_select %p70, %s71, %s72
      %p76 = pneg %p70
      %p77 = scmp.eq.s32.totalorder %s19, 1
      %p78 = por %p76, %p77
      %p79 = scmp.ne.s32.totalorder %s71, %s74
      %p80 = scmp.eq.s32.totalorder %s19, 0
      %p81 = por %p79, %p80
      %p82 = scmp.ne.s32.totalorder %s71, %s74
      %p83 = scmp.eq.s32.totalorder %s24, 1
      %p84 = por %p82, %p83
      %p85 = scmp.ne.s32.totalorder %s74, %s75
      %p86 = scmp.eq.s32.totalorder %s24, 0
      %p87 = por %p85, %p86
      %p88 = scmp.ne.s32.totalorder %s74, %s75
      %p89 = scmp.eq.s32.totalorder %s25, 1
      %p90 = por %p88, %p89
      %p92 = scmp.ne.s32.totalorder %s75, %s91
      %p93 = scmp.eq.s32.totalorder %s25, 0
      %p94 = por %p92, %p93
      %s95 = ssub.s32 %s26, %s38
      %p96 = scmp.eq.s32.totalorder %s95, 0
      %s98 = sadd.s32 %s97, 1
      %s99 = scalar_select %p96, %s97, %s98
      %p102 = pneg %p96
      %p103 = scmp.eq.s32.totalorder %s19, 1
      %p104 = por %p102, %p103
      %p105 = scmp.ne.s32.totalorder %s97, %s100
      %p106 = scmp.eq.s32.totalorder %s19, 0
      %p107 = por %p105, %p106
      %p108 = scmp.ne.s32.totalorder %s97, %s100
      %p109 = scmp.eq.s32.totalorder %s24, 1
      %p110 = por %p108, %p109
      %p111 = scmp.ne.s32.totalorder %s100, %s101
      %p112 = scmp.eq.s32.totalorder %s24, 0
      %p113 = por %p111, %p112
      %p114 = scmp.ne.s32.totalorder %s100, %s101
      %p115 = scmp.eq.s32.totalorder %s25, 1
      %p116 = por %p114, %p115
      %p118 = scmp.ne.s32.totalorder %s101, %s117
      %p119 = scmp.eq.s32.totalorder %s25, 0
      %p120 = por %p118, %p119
      %p121 = scmp.le.s32.totalorder 1, %s19
      %p122 = scmp.lt.s32.totalorder %s19, 3
      %p123 = pnand %p121, %p122
      %p124 = pneg %p123
      // Predicated region
      $region9: #{tpu_custom_call.1} parent=5 // pred_check
        _
      $region10: #{tpu_custom_call.1} parent=5 // pred_check_branch
        %126 = sbr.rel (%p123) target = $region12
      $region11: #{tpu_custom_call.1} parent=5 // pred_region
        %s127 = ssub.s32 %s19, 1
      $region12: #{tpu_custom_call.1} parent=5 // pred_fallthru
        _
      %p128 = scmp.lt.s32.totalorder %s19, 2
      // Predicated region
      $region13: #{tpu_custom_call.1} parent=5 // pred_check
        %p129 = pneg %p128
      $region14: #{tpu_custom_call.1} parent=5 // pred_check_branch
        %131 = sbr.rel (%p129) target = $region16
      $region15: #{tpu_custom_call.1} parent=5 // pred_region
        // Predicated region
        $region17: #{tpu_custom_call.1} parent=15 // pred_check
          %p132 = pneg %p53
        $region18: #{tpu_custom_call.1} parent=15 // pred_check_branch
          %134 = sbr.rel (%p132) target = $region20
        $region19: #{tpu_custom_call.1} parent=15 // pred_region
          %s135 = sand.u32 %s43, 1
          %s136 = scalar_lea.sflag [#allocation6], %s135
          %s137 = sand.u32 %s43, 1
          %s138 = smul.addr %s137, 8
          %s139 = scalar_lea.vmem [#allocation5], %s138
          %s140 = sadd.s32 %s26, %s27
          %s142 = ssub.s32 128, 128
          %143 = vsyncadd %s136, %s142
          %s144 = smul.addr %s140, 128
          %s145 = scalar_lea.hbm %s1, %s144
          %s147 = sshll.u32 %s139, 4
          %s148 = int_to_ptr.vmem [resolvable:$true] %s147
          %150 = dma.hbm_to_vmem [thread:$0]  %s145, 128, %s148, %s136
        $region20: #{tpu_custom_call.1} parent=15 // pred_fallthru
          _
        // Predicated region
        $region21: #{tpu_custom_call.1} parent=15 // pred_check
          %p151 = pneg %p81
        $region22: #{tpu_custom_call.1} parent=15 // pred_check_branch
          %153 = sbr.rel (%p151) target = $region24
        $region23: #{tpu_custom_call.1} parent=15 // pred_region
          %s154 = sand.u32 %s71, 1
          %s155 = scalar_lea.sflag [#allocation9], %s154
          %s156 = sand.u32 %s71, 1
          %s157 = smul.addr %s156, 8
          %s158 = scalar_lea.vmem [#allocation8], %s157
          %s159 = sadd.s32 %s26, %s27
          %s161 = ssub.s32 128, 128
          %162 = vsyncadd %s155, %s161
          %s163 = smul.addr %s159, 128
          %s164 = scalar_lea.hbm %s2, %s163
          %s166 = sshll.u32 %s158, 4
          %s167 = int_to_ptr.vmem [resolvable:$true] %s166
          %169 = dma.hbm_to_vmem [thread:$0]  %s164, 128, %s167, %s155
        $region24: #{tpu_custom_call.1} parent=15 // pred_fallthru
          _
      $region16: #{tpu_custom_call.1} parent=5 // pred_fallthru
        _
      %p170 = scmp.le.s32.totalorder 1, %s19
      %p171 = scmp.lt.s32.totalorder %s19, 3
      %p172 = pnand %p170, %p171
      %p173 = pneg %p172
      // Predicated region
      $region25: #{tpu_custom_call.1} parent=5 // pred_check
        _
      $region26: #{tpu_custom_call.1} parent=5 // pred_check_branch
        %175 = sbr.rel (%p172) target = $region28
      $region27: #{tpu_custom_call.1} parent=5 // pred_region
        %s176 = ssub.s32 %s19, 1
        %s177 = sand.u32 %s46, 1
        %s178 = scalar_lea.sflag [#allocation6], %s177
        %s179 = sand.u32 %s46, 1
        %s180 = smul.addr %s179, 8
        %s181 = scalar_lea.vmem [#allocation5], %s180
        // Predicated region
        $region29: #{tpu_custom_call.1} parent=27 // pred_check
          %p182 = pneg %p59
        $region30: #{tpu_custom_call.1} parent=27 // pred_check_branch
          %184 = sbr.rel (%p182) target = $region32
        $region31: #{tpu_custom_call.1} parent=27 // pred_region
          %185 = dma.done %s178, 128
        $region32: #{tpu_custom_call.1} parent=27 // pred_fallthru
          _
        %s186 = sand.u32 %s74, 1
        %s187 = scalar_lea.sflag [#allocation9], %s186
        %s188 = sand.u32 %s74, 1
        %s189 = smul.addr %s188, 8
        %s190 = scalar_lea.vmem [#allocation8], %s189
        // Predicated region
        $region33: #{tpu_custom_call.1} parent=27 // pred_check
          %p191 = pneg %p87
        $region34: #{tpu_custom_call.1} parent=27 // pred_check_branch
          %193 = sbr.rel (%p191) target = $region36
        $region35: #{tpu_custom_call.1} parent=27 // pred_region
          %194 = dma.done %s187, 128
        $region36: #{tpu_custom_call.1} parent=27 // pred_fallthru
          _
        %s195 = sand.u32 %s46, 1
        %s196 = scalar_lea.sflag [#allocation6], %s195
        %s197 = sand.u32 %s46, 1
        %s198 = smul.addr %s197, 8
        %s199 = scalar_lea.vmem [#allocation5], %s198
        %p200 = pneg %p59
        %p201 = pneg %p56
        %s202 = sand.u32 %s74, 1
        %s203 = scalar_lea.sflag [#allocation9], %s202
        %s204 = sand.u32 %s74, 1
        %s205 = smul.addr %s204, 8
        %s206 = scalar_lea.vmem [#allocation8], %s205
        %p207 = pneg %p87
        %p208 = pneg %p84
        %p209 = pneg %p113
        %p210 = pneg %p110
        %s211 = sand.u32 %s100, 1
        %s212 = scalar_lea.sflag [#allocation7], %s211
        %s213 = sand.u32 %s100, 1
        %s214 = smul.addr %s213, 8
        %s215 = scalar_lea.vmem [#allocation10], %s214
        %s216 = sadd.s32 %s28, %s29
        %s217 = sadd.s32 %s28, %s29
        %p218 = scmp.eq.s32.totalorder %s29, 0
        // Predicated region
        $region37: #{tpu_custom_call.1} parent=27 // pred_check
          %p219 = pneg %p218
        $region38: #{tpu_custom_call.1} parent=27 // pred_check_branch
          %221 = sbr.rel (%p219) target = $region40
        $region39: #{tpu_custom_call.1} parent=27 // pred_region
          %222 = vst [vmem:[#allocation2] sm:$0xff] 0.0
        $region40: #{tpu_custom_call.1} parent=27 // pred_fallthru
          _
        %v223 = vld [vmem:[%s181] sm:$0xff]
        %v224 = vld [vmem:[%s190] sm:$0xff]
        %s225 = sld [smem:[#allocation4]]
        %v226 = vsub.f32 %v224, %v223
        %v227 = vand.u32 2147483647, %v226
        %vm228 = vcmp.le.f32.partialorder %v223, 0.0
        %v229 = vstv %s225
        %v230 = vsel %vm228, %v229, 1.0
        %v231 = vmul.f32 %v230, %v226
        %v232 = vmul.f32 %v231, %v226
        %s233 = smul.f32 %s225, 2.0
        %vm234 = vcmp.le.f32.partialorder %v223, 20.0
        %v235 = vsel %vm234, %v229, 1.0
        %v236 = vstv %s233
        %v237 = vsel %vm228, %v236, %v235
        %v238 = vmul.f32 %v227, 2.0
        %v239 = vmul.f32 %v237, %v238
        %v240 = vand.u32 2147483647, %v224
        %v241 = vand.u32 2147483647, %v223
        %v242 = vadd.f32 %v240, %v241
        %v243 = vrcp.pop %v242
        %v244 = vmul.f32 %v239, %v243
        %v245 = vadd.f32 %v232, %v244
        %v246 = vld [vmem:[#allocation2] sm:$0xff]
        %v247 = vadd.f32 %v246, %v245
        %248 = vst [vmem:[#allocation2] sm:$0xff] %v247
        // Predicated region
        $region41: #{tpu_custom_call.1} parent=27 // pred_check
          %p249 = pneg %p218
        $region42: #{tpu_custom_call.1} parent=27 // pred_check_branch
          %251 = sbr.rel (%p249) target = $region44
        $region43: #{tpu_custom_call.1} parent=27 // pred_region
          %v252 = vld [vmem:[#allocation2] sm:$0xff]
          %253 = vst [vmem:[%s215] sm:$0xff] %v252
        $region44: #{tpu_custom_call.1} parent=27 // pred_fallthru
          _
        %s254 = sand.u32 %s100, 1
        %s255 = scalar_lea.sflag [#allocation7], %s254
        %s256 = sand.u32 %s100, 1
        %s257 = smul.addr %s256, 8
        %s258 = scalar_lea.vmem [#allocation10], %s257
        // Predicated region
        $region45: #{tpu_custom_call.1} parent=27 // pred_check
          %p259 = pneg %p110
        $region46: #{tpu_custom_call.1} parent=27 // pred_check_branch
          %261 = sbr.rel (%p259) target = $region48
        $region47: #{tpu_custom_call.1} parent=27 // pred_region
          %s263 = ssub.s32 128, 128
          %264 = vsyncadd %s255, %s263
          %s265 = smul.addr %s28, 128
          %s266 = scalar_lea.hbm %s3, %s265
          %s268 = sshll.u32 %s258, 4
          %s269 = int_to_ptr.vmem [resolvable:$true] %s268
          %271 = dma.vmem_to_hbm [thread:$0]  %s269, 128, %s266, %s255
        $region48: #{tpu_custom_call.1} parent=27 // pred_fallthru
          _
      $region28: #{tpu_custom_call.1} parent=5 // pred_fallthru
        _
      %p272 = scmp.le.s32.totalorder 2, %s19
      // Predicated region
      $region49: #{tpu_custom_call.1} parent=5 // pred_check
        %p273 = pneg %p272
      $region50: #{tpu_custom_call.1} parent=5 // pred_check_branch
        %275 = sbr.rel (%p273) target = $region52
      $region51: #{tpu_custom_call.1} parent=5 // pred_region
        %s276 = ssub.s32 %s19, 2
        // Predicated region
        $region53: #{tpu_custom_call.1} parent=51 // pred_check
          %p277 = pneg %p116
        $region54: #{tpu_custom_call.1} parent=51 // pred_check_branch
          %279 = sbr.rel (%p277) target = $region56
        $region55: #{tpu_custom_call.1} parent=51 // pred_region
          %s280 = sand.u32 %s101, 1
          %s281 = scalar_lea.sflag [#allocation7], %s280
          %s282 = sand.u32 %s101, 1
          %s283 = smul.addr %s282, 8
          %s284 = scalar_lea.vmem [#allocation10], %s283
          %285 = dma.done %s281, 128
        $region56: #{tpu_custom_call.1} parent=51 // pred_fallthru
          _
      $region52: #{tpu_custom_call.1} parent=5 // pred_fallthru
        _
    $region6: #{tpu_custom_call.1} parent=1 // loop_footer
      %s23 = sadd.s32 1, %s19
    $region7: #{tpu_custom_call.1} parent=1 // loop_footer_branch
      %18 = sbr.rel target = $region3
    $region8: #{tpu_custom_call.1} parent=1 // loop_exit
      _
    %286 = vsyncpa [#allocation6], 1
    %s287 = scalar_lea.sflag [#allocation6], 1
    %288 = vsyncpa %s287, 1
    %289 = vsyncpa [#allocation9], 1
    %s290 = scalar_lea.sflag [#allocation9], 1
    %291 = vsyncpa %s290, 1
    %292 = vsyncpa [#allocation7], 1
    %s293 = scalar_lea.sflag [#allocation7], 1
    %294 = vsyncpa %s293, 1

</llo_original>
